<compile_context>
chip_gen: v6e
topology: v6e:2x2x1
jax: 0.10.0
libtpu: 0.0.40
codegen_flags: <defaults>
</compile_context>

<pallas_src>
import functools
import time

import jax
import jax.numpy as jnp
from jax.experimental import pallas as pl
from jax.experimental.pallas import tpu as pltpu


def _conv_act_kernel(kflip_ref, x_ref, out_ref, *, K, H, W, pad_lo, activation):
    """x_ref/out_ref: (TB, H*W) VMEM blocks; kflip_ref: (K, K) f32 in SMEM."""
    x = x_ref[...].astype(jnp.float32)              # (TB, HW) f32 working copy
    TB, HW = x.shape

    # Flat plane-local index of every element; column index without a divide
    # when W is a power of two (row masks never need `row` at all).
    flat = jax.lax.broadcasted_iota(jnp.int32, (TB, HW), 1)
    need_col = any((q - pad_lo) != 0 for q in range(K))
    if need_col:
        if W & (W - 1) == 0:
            col = jnp.bitwise_and(flat, jnp.int32(W - 1))
        else:
            col = flat % W                          # non-pow2 fallback
    else:
        col = None

    # --- K vertical rolls, each row-masked exactly once (flat-index compare).
    v = []
    for p in range(K):
        dp = p - pad_lo
        if dp == 0:
            v.append(x)
            continue
        shifted = pltpu.roll(x, shift=(-dp * W) % HW, axis=1)   # [m] = x[m+dp*W]
        if dp > 0:
            rmask = flat < jnp.int32((H - dp) * W)
        else:
            rmask = flat >= jnp.int32((-dp) * W)
        v.append(jnp.where(rmask, shifted, jnp.float32(0.0)))

    # --- per column offset: VALU-combine the K vertical taps, then ONE
    # horizontal roll + ONE column mask.
    acc = None
    for q in range(K):
        dq = q - pad_lo
        u = kflip_ref[0, q] * v[0]
        for p in range(1, K):
            u = u + kflip_ref[p, q] * v[p]
        if dq == 0:
            term = u
        else:
            hshift = pltpu.roll(u, shift=(-dq) % HW, axis=1)    # [m] = u[m+dq]
            if dq > 0:
                cmask = col < jnp.int32(W - dq)
            else:
                cmask = col >= jnp.int32(-dq)
            term = jnp.where(cmask, hshift, jnp.float32(0.0))
        acc = term if acc is None else acc + term

    if activation == "mish":
        # mish(x) = x * tanh(softplus(x)) = x * n / (n + 2), n = e*(e+2).
        # Clamp keeps exp finite; for x >= 20, n/(n+2) == 1 in f32 anyway.
        e = jnp.exp(jnp.minimum(acc, jnp.float32(20.0)))
        n = e * (e + jnp.float32(2.0))
        acc = acc * (n / (n + jnp.float32(2.0)))
    elif activation == "leaky":
        acc = jnp.where(acc >= 0, acc, jnp.float32(0.01) * acc)

    out_ref[...] = acc.astype(out_ref.dtype)


def _device_config():
    """(vmem_limit_bytes, block_budget_bytes, two_tensorcores)."""
    try:
        kind = jax.devices()[0].device_kind.lower()
    except Exception:
        kind = ""
    if "v7" in kind:                       # 64 MiB physical VMEM, 2 TCs/chip
        return 48 * 1024 * 1024, 36 * 1024 * 1024, True
    if "v5" in kind or "v6" in kind:       # 128 MiB physical VMEM, 1 TC
        return 100 * 1024 * 1024, 72 * 1024 * 1024, False
    return 48 * 1024 * 1024, 36 * 1024 * 1024, False


def _pick_block_rows(P, HW, budget_bytes, K, in_bytes, out_bytes, two_cores):
    """Planes per block: largest sublane multiple fitting the VMEM budget."""
    # Resident footprint per block row: double-buffered in + out pipeline
    # copies, the f32 working copy, K vertical-roll temporaries, accumulator.
    per_row = HW * (2 * in_bytes + 2 * out_bytes + (K + 3) * 4)
    max_tb = int(budget_bytes // per_row)

    if max_tb >= P:
        tb = P
    else:
        # TODO(synk): if even 8 rows exceed the budget (huge H*W, e.g.
        # 1024x1024 on v7x), a W-blocked path with a (K-1)//2-column halo is
        # needed; not implemented here.
        tb = min(P, max(8, (max_tb // 8) * 8))

    if two_cores and P >= 16:
        # v7x: the "parallel" grid axis is sharded across 2 TensorCores, so
        # aim for an even number (>= 2) of grid steps (no single-core runs,
        # no 1-step imbalance tail).
        tb = min(tb, ((-(-P // 2) + 7) // 8) * 8)
        while (-(-P // tb)) % 2 == 1 and tb > 8:
            tb -= 8
    return tb


@functools.partial(jax.jit, static_argnames=("activation",))
def _conv_layer_jit(x, kernel, *, activation):
    N, C, H, W = x.shape
    K = kernel.shape[0]
    pad_lo = (K - 1) // 2
    P, HW = N * C, H * W

    # True convolution == correlation with the flipped kernel.
    kflip = kernel[::-1, ::-1].astype(jnp.float32)
    x2 = x.reshape(P, HW)                     # metadata-only reshape

    vmem_limit, block_budget, two_cores = _device_config()
    in_bytes = x.dtype.itemsize
    TB = _pick_block_rows(P, HW, block_budget, K, in_bytes, in_bytes, two_cores)

    out = pl.pallas_call(
        functools.partial(_conv_act_kernel, K=K, H=H, W=W, pad_lo=pad_lo,
                          activation=activation),
        out_shape=jax.ShapeDtypeStruct((P, HW), x.dtype),
        grid=(pl.cdiv(P, TB),),
        in_specs=[
            pl.BlockSpec(memory_space=pltpu.MemorySpace.SMEM),   # (K, K) filter
            pl.BlockSpec((TB, HW), lambda i: (i, 0)),            # TB planes
        ],
        out_specs=pl.BlockSpec((TB, HW), lambda i: (i, 0)),
        compiler_params=pltpu.CompilerParams(
            dimension_semantics=("parallel",),
            vmem_limit_bytes=vmem_limit),
    )(kflip, x2)
    return out.reshape(N, C, H, W)


def conv_layer_forward(x, kernel, activation, *, timing_runs=3):
    """Matches ConvLayer.forward: returns (output, elapsed_seconds).
    elapsed is the min wall time over warm, jitted runs (compile excluded)."""
    y = jax.block_until_ready(_conv_layer_jit(x, kernel, activation=activation))
    best = float("inf")
    for _ in range(timing_runs):
        t0 = time.perf_counter()
        jax.block_until_ready(_conv_layer_jit(x, kernel, activation=activation))
        best = min(best, time.perf_counter() - t0)
    return y, best


def _reference(x, kernel, activation):
    """Pure-JAX reference for correctness checking."""
    N, C, H, W = x.shape
    K = kernel.shape[0]
    pad_lo = (K - 1) // 2
    pad_hi = K - 1 - pad_lo
    xpad = jnp.pad(x, ((0, 0), (0, 0), (pad_lo, pad_hi), (pad_lo, pad_hi)))
    kflip = kernel[::-1, ::-1]
    out = jnp.zeros_like(x)
    for p in range(K):
        for q in range(K):
            out = out + kflip[p, q] * xpad[:, :, p:p + H, q:q + W]
    if activation == "mish":
        out = out * jnp.tanh(jax.nn.softplus(out))
    elif activation == "leaky":
        out = jnp.where(out >= 0, out, 0.01 * out)
    return out


if __name__ == "__main__":
    # Module config (in_channels/out_channels/stride/padding unused in forward)
    in_channels, out_channels = 4, 4
    kernel_size, stride, padding = 3, 1, 1

    key = jax.random.PRNGKey(0)
    kx, kk = jax.random.split(key)
    x = jax.random.normal(kx, (2, in_channels, 16, 16), dtype=jnp.float32)
    kernel = jax.random.normal(kk, (kernel_size, kernel_size), dtype=jnp.float32)

    y, elapsed = conv_layer_forward(x, kernel, "mish")
    y = jax.block_until_ready(y)
    assert y.shape == x.shape

    y_ref = _reference(x, kernel, "mish")
    assert jnp.allclose(y, y_ref, atol=1e-4, rtol=1e-4), "mish mismatch vs reference"

    y2, _ = conv_layer_forward(x, kernel, "leaky")
    y2 = jax.block_until_ready(y2)
    assert jnp.allclose(y2, _reference(x, kernel, "leaky"),
                        atol=1e-5, rtol=1e-5), "leaky mismatch vs reference"

    print("KERNEL_OK")
</pallas_src>

<mosaic_0001>
module attributes {stable_mosaic.version = 11 : i64} {
  func.func @_conv_act_kernel(%arg0: i32, %arg1: memref<3x3xf32, #tpu.memory_space<smem>>, %arg2: memref<8x256xf32, #tpu.memory_space<vmem>>, %arg3: memref<8x256xf32, #tpu.memory_space<vmem>>) attributes {dimension_semantics = [#tpu.dimension_semantics<parallel>], iteration_bounds = array<i64: 1>, scalar_prefetch = 0 : i64, scratch_operands = 0 : i64, tpu.core_type = #tpu.core_type<tc>, window_params = [{transform_indices = @transform_0, window_bounds = array<i64: 3, 3>}, {transform_indices = @transform_1, window_bounds = array<i64: 8, 256>}, {transform_indices = @transform_2, window_bounds = array<i64: 8, 256>}]} {
    %c0 = arith.constant 0 : index
    %c0_0 = arith.constant 0 : index
    %0 = vector.load %arg2[%c0, %c0_0] : memref<8x256xf32, #tpu.memory_space<vmem>>, vector<8x256xf32>
    %1 = tpu.iota {dimensions = array<i32: 1>} : vector<8x256xi32>
    %c15_i32 = arith.constant 15 : i32
    %2 = vector.broadcast %c15_i32 : i32 to vector<8x256xi32>
    %3 = arith.andi %1, %2 : vector<8x256xi32>
    %c16_i32 = arith.constant 16 : i32
    %4 = tpu.dynamic_rotate %0 by %c16_i32 dim 1 : vector<8x256xf32>, i32 -> vector<8x256xf32>
    %c16_i32_1 = arith.constant 16 : i32
    %5 = vector.broadcast %c16_i32_1 : i32 to vector<8x256xi32>
    %6 = arith.cmpi sge, %1, %5 : vector<8x256xi32>
    %cst = arith.constant 0.000000e+00 : f32
    %7 = vector.broadcast %cst : f32 to vector<8x256xf32>
    %8 = arith.select %6, %4, %7 : vector<8x256xi1>, vector<8x256xf32>
    %c240_i32 = arith.constant 240 : i32
    %9 = tpu.dynamic_rotate %0 by %c240_i32 dim 1 : vector<8x256xf32>, i32 -> vector<8x256xf32>
    %c240_i32_2 = arith.constant 240 : i32
    %10 = vector.broadcast %c240_i32_2 : i32 to vector<8x256xi32>
    %11 = arith.cmpi slt, %1, %10 : vector<8x256xi32>
    %cst_3 = arith.constant 0.000000e+00 : f32
    %12 = vector.broadcast %cst_3 : f32 to vector<8x256xf32>
    %13 = arith.select %11, %9, %12 : vector<8x256xi1>, vector<8x256xf32>
    %c0_4 = arith.constant 0 : index
    %c0_5 = arith.constant 0 : index
    %14 = memref.load %arg1[%c0_4, %c0_5] : memref<3x3xf32, #tpu.memory_space<smem>>
    %15 = vector.broadcast %14 : f32 to vector<8x256xf32>
    %16 = arith.mulf %15, %8 : vector<8x256xf32>
    %c1 = arith.constant 1 : index
    %c0_6 = arith.constant 0 : index
    %17 = memref.load %arg1[%c1, %c0_6] : memref<3x3xf32, #tpu.memory_space<smem>>
    %18 = vector.broadcast %17 : f32 to vector<8x256xf32>
    %19 = arith.mulf %18, %0 : vector<8x256xf32>
    %20 = arith.addf %16, %19 : vector<8x256xf32>
    %c2 = arith.constant 2 : index
    %c0_7 = arith.constant 0 : index
    %21 = memref.load %arg1[%c2, %c0_7] : memref<3x3xf32, #tpu.memory_space<smem>>
    %22 = vector.broadcast %21 : f32 to vector<8x256xf32>
    %23 = arith.mulf %22, %13 : vector<8x256xf32>
    %24 = arith.addf %20, %23 : vector<8x256xf32>
    %c1_i32 = arith.constant 1 : i32
    %25 = tpu.dynamic_rotate %24 by %c1_i32 dim 1 : vector<8x256xf32>, i32 -> vector<8x256xf32>
    %c1_i32_8 = arith.constant 1 : i32
    %26 = vector.broadcast %c1_i32_8 : i32 to vector<8x256xi32>
    %27 = arith.cmpi sge, %3, %26 : vector<8x256xi32>
    %cst_9 = arith.constant 0.000000e+00 : f32
    %28 = vector.broadcast %cst_9 : f32 to vector<8x256xf32>
    %29 = arith.select %27, %25, %28 : vector<8x256xi1>, vector<8x256xf32>
    %c0_10 = arith.constant 0 : index
    %c1_11 = arith.constant 1 : index
    %30 = memref.load %arg1[%c0_10, %c1_11] : memref<3x3xf32, #tpu.memory_space<smem>>
    %31 = vector.broadcast %30 : f32 to vector<8x256xf32>
    %32 = arith.mulf %31, %8 : vector<8x256xf32>
    %c1_12 = arith.constant 1 : index
    %c1_13 = arith.constant 1 : index
    %33 = memref.load %arg1[%c1_12, %c1_13] : memref<3x3xf32, #tpu.memory_space<smem>>
    %34 = vector.broadcast %33 : f32 to vector<8x256xf32>
    %35 = arith.mulf %34, %0 : vector<8x256xf32>
    %36 = arith.addf %32, %35 : vector<8x256xf32>
    %c2_14 = arith.constant 2 : index
    %c1_15 = arith.constant 1 : index
    %37 = memref.load %arg1[%c2_14, %c1_15] : memref<3x3xf32, #tpu.memory_space<smem>>
    %38 = vector.broadcast %37 : f32 to vector<8x256xf32>
    %39 = arith.mulf %38, %13 : vector<8x256xf32>
    %40 = arith.addf %36, %39 : vector<8x256xf32>
    %41 = arith.addf %29, %40 : vector<8x256xf32>
    %c0_16 = arith.constant 0 : index
    %c2_17 = arith.constant 2 : index
    %42 = memref.load %arg1[%c0_16, %c2_17] : memref<3x3xf32, #tpu.memory_space<smem>>
    %43 = vector.broadcast %42 : f32 to vector<8x256xf32>
    %44 = arith.mulf %43, %8 : vector<8x256xf32>
    %c1_18 = arith.constant 1 : index
    %c2_19 = arith.constant 2 : index
    %45 = memref.load %arg1[%c1_18, %c2_19] : memref<3x3xf32, #tpu.memory_space<smem>>
    %46 = vector.broadcast %45 : f32 to vector<8x256xf32>
    %47 = arith.mulf %46, %0 : vector<8x256xf32>
    %48 = arith.addf %44, %47 : vector<8x256xf32>
    %c2_20 = arith.constant 2 : index
    %c2_21 = arith.constant 2 : index
    %49 = memref.load %arg1[%c2_20, %c2_21] : memref<3x3xf32, #tpu.memory_space<smem>>
    %50 = vector.broadcast %49 : f32 to vector<8x256xf32>
    %51 = arith.mulf %50, %13 : vector<8x256xf32>
    %52 = arith.addf %48, %51 : vector<8x256xf32>
    %c255_i32 = arith.constant 255 : i32
    %53 = tpu.dynamic_rotate %52 by %c255_i32 dim 1 : vector<8x256xf32>, i32 -> vector<8x256xf32>
    %c15_i32_22 = arith.constant 15 : i32
    %54 = vector.broadcast %c15_i32_22 : i32 to vector<8x256xi32>
    %55 = arith.cmpi slt, %3, %54 : vector<8x256xi32>
    %cst_23 = arith.constant 0.000000e+00 : f32
    %56 = vector.broadcast %cst_23 : f32 to vector<8x256xf32>
    %57 = arith.select %55, %53, %56 : vector<8x256xi1>, vector<8x256xf32>
    %58 = arith.addf %41, %57 : vector<8x256xf32>
    %cst_24 = arith.constant 2.000000e+01 : f32
    %59 = vector.broadcast %cst_24 : f32 to vector<8x256xf32>
    %60 = arith.minimumf %58, %59 : vector<8x256xf32>
    %61 = math.exp %60 : vector<8x256xf32>
    %cst_25 = arith.constant 2.000000e+00 : f32
    %62 = vector.broadcast %cst_25 : f32 to vector<8x256xf32>
    %63 = arith.addf %61, %62 : vector<8x256xf32>
    %64 = arith.mulf %61, %63 : vector<8x256xf32>
    %cst_26 = arith.constant 2.000000e+00 : f32
    %65 = vector.broadcast %cst_26 : f32 to vector<8x256xf32>
    %66 = arith.addf %64, %65 : vector<8x256xf32>
    %67 = arith.divf %64, %66 : vector<8x256xf32>
    %68 = arith.mulf %58, %67 : vector<8x256xf32>
    %c0_27 = arith.constant 0 : index
    %c0_28 = arith.constant 0 : index
    %69 = vector.load %arg3[%c0_27, %c0_28] : memref<8x256xf32, #tpu.memory_space<vmem>>, vector<8x256xf32>
    tpu.vector_store %arg3[%c0_27, %c0_28], %68 {strides = array<i32>} : memref<8x256xf32, #tpu.memory_space<vmem>>, vector<8x256xf32>,
    return
  }
  func.func @transform_0(%arg0: i32) -> (i32, i32) {
    %c0_i32 = arith.constant 0 : i32
    %c0_i32_0 = arith.constant 0 : i32
    %c0_i32_1 = arith.constant 0 : i32
    return %c0_i32, %c0_i32_0 : i32, i32
  }
  func.func @transform_1(%arg0: i32) -> (i32, i32) {
    %c0_i32 = arith.constant 0 : i32
    %c0_i32_0 = arith.constant 0 : i32
    return %arg0, %c0_i32 : i32, i32
  }
  func.func @transform_2(%arg0: i32) -> (i32, i32) {
    %c0_i32 = arith.constant 0 : i32
    %c0_i32_0 = arith.constant 0 : i32
    return %arg0, %c0_i32 : i32, i32
  }
}

</mosaic_0001>

<llo_original>
// kernel: _conv_layer_jit.1
$region0: #{_conv_layer_jit.1}
  #allocation0 [shape = 'u32[]', space=smem, size = 0x4, offset = 0x4, fixed_abs, tag = 'smem constant byte address 0x4 - core index']
  #allocation1 [shape = 'u32[144,128]{1,0:T(1,128)}', space=vmem, size = 0x12000, scoped, tag = 'internal scratch']
  %s0 = inlined_call_operand.vmem [shape: f32[3,3], index: 0, kind: input, shape index: {}]
  %s1 = inlined_call_operand.vmem [shape: f32[8,256], index: 1, kind: input, shape index: {}]
  %s2 = inlined_call_operand.vmem [shape: f32[8,256], index: 2, kind: output, shape index: {}]
  %s3 = sld [smem:[#allocation0]]
  $region22: #{_conv_layer_jit.1} parent=0
    _
  %s5 = ssub.s32 1, %s3
  %s6 = scalar_select 0, %s5, %s3
  $region1: #{_conv_layer_jit.1} parent=0
    #allocation2 [shape = 'u8[2048]{0}', space=smem, size = 0x800, scoped, tag = 'input window, operand 0, single buffered']
    #allocation3 [shape = 's32[1]{0}', space=sflag, size = 0x4, scoped, tag = 'scoped memory for _conv_layer_jit.1']
    %7 = vsyncpa [#allocation3], 0
    // Predicated region
    $region2: #{_conv_layer_jit.1} parent=1 // pred_check
      _
    $region3: #{_conv_layer_jit.1} parent=1 // pred_check_branch
      %9 = sbr.rel (0) target = $region5
    $region4: #{_conv_layer_jit.1} parent=1 // pred_region
      %s11 = ssub.s32 64, 64
      %12 = vsyncadd [#allocation3], %s11
      %s14 = sshll.u32 %s0, 4
      %s15 = int_to_ptr.vmem [resolvable:$true] %s14
      %17 = dma.vmem_to_smem %s15, 64, [#allocation2], [#allocation3]
    $region5: #{_conv_layer_jit.1} parent=1 // pred_fallthru
      _
    // Predicated region
    $region6: #{_conv_layer_jit.1} parent=1 // pred_check
      _
    $region7: #{_conv_layer_jit.1} parent=1 // pred_check_branch
      %19 = sbr.rel (0) target = $region9
    $region8: #{_conv_layer_jit.1} parent=1 // pred_region
      _
    $region9: #{_conv_layer_jit.1} parent=1 // pred_fallthru
      _
    // Predicated region
    $region10: #{_conv_layer_jit.1} parent=1 // pred_check
      _
    $region11: #{_conv_layer_jit.1} parent=1 // pred_check_branch
      %21 = sbr.rel (0) target = $region13
    $region12: #{_conv_layer_jit.1} parent=1 // pred_region
      %22 = dma.done [#allocation3], 64
    $region13: #{_conv_layer_jit.1} parent=1 // pred_fallthru
      _
    %23 = sfence
    %v24 = vld [vmem:[%s1] sm:$0xff]
    %v25 = vld [vmem:[%s1 + $0x8] sm:$0xff]
    %v26 = vlaneseq
    %v27 = vand.u32 %v26, 127
    %v28 = vadd.s32 %v27, 128
    %v29 = vand.u32 %v27, 15
    %v30 = vand.u32 %v28, 15
    %31 = vrot.lane.b32.xlu0 %v24, 16
    %v32 = vpop.permute.xlu0 %31
    %33 = vrot.lane.b32.xlu0 %v25, 16
    %v34 = vpop.permute.xlu0 %33
    %vm35 = vcmp.lt.s32.totalorder %v27, 16
    %v36 = vsel %vm35, %v32, %v34
    %v37 = vsel %vm35, %v34, %v32
    %vm38 = vcmp.ge.s32.totalorder %v27, 16
    %vm39 = vcmp.ge.s32.totalorder %v28, 16
    %v40 = vsel %vm38, %v37, 0.0
    %v41 = vsel %vm39, %v36, 0.0
    %42 = vrot.lane.b32.xlu0 %v24, 112
    %v43 = vpop.permute.xlu0 %42
    %44 = vrot.lane.b32.xlu0 %v25, 112
    %v45 = vpop.permute.xlu0 %44
    %vm46 = vcmp.lt.s32.totalorder %v27, 112
    %v47 = vsel %vm46, %v43, %v45
    %v48 = vsel %vm46, %v45, %v43
    %vm49 = vcmp.lt.s32.totalorder %v27, 240
    %vm50 = vcmp.lt.s32.totalorder %v28, 240
    %v51 = vsel %vm49, %v47, 0.0
    %v52 = vsel %vm50, %v48, 0.0
    %s53 = sld [smem:[#allocation2]]
    %v54 = vstv %s53
    %v55 = vmul.f32 %v54, %v40
    %v56 = vmul.f32 %v54, %v41
    %s57 = sld [smem:[#allocation2 + $0x80]]
    %v58 = vstv %s57
    %v59 = vmul.f32 %v58, %v24
    %v60 = vmul.f32 %v58, %v25
    %v61 = vadd.f32 %v55, %v59
    %v62 = vadd.f32 %v56, %v60
    %s63 = sld [smem:[#allocation2 + $0x100]]
    %v64 = vstv %s63
    %v65 = vmul.f32 %v64, %v51
    %v66 = vmul.f32 %v64, %v52
    %v67 = vadd.f32 %v61, %v65
    %v68 = vadd.f32 %v62, %v66
    %69 = vrot.lane.b32.xlu0 %v67, 1
    %v70 = vpop.permute.xlu0 %69
    %71 = vrot.lane.b32.xlu0 %v68, 1
    %v72 = vpop.permute.xlu0 %71
    %vm73 = vcmp.lt.s32.totalorder %v27, 1
    %v74 = vsel %vm73, %v70, %v72
    %v75 = vsel %vm73, %v72, %v70
    %vm76 = vcmp.ge.s32.totalorder %v29, 1
    %vm77 = vcmp.ge.s32.totalorder %v30, 1
    %v78 = vsel %vm76, %v75, 0.0
    %v79 = vsel %vm77, %v74, 0.0
    %s80 = sld [smem:[#allocation2 + $0x1]]
    %v81 = vstv %s80
    %v82 = vmul.f32 %v81, %v40
    %v83 = vmul.f32 %v81, %v41
    %s84 = sld [smem:[#allocation2 + $0x81]]
    %v85 = vstv %s84
    %v86 = vmul.f32 %v85, %v24
    %v87 = vmul.f32 %v85, %v25
    %v88 = vadd.f32 %v82, %v86
    %v89 = vadd.f32 %v83, %v87
    %s90 = sld [smem:[#allocation2 + $0x101]]
    %v91 = vstv %s90
    %v92 = vmul.f32 %v91, %v51
    %v93 = vmul.f32 %v91, %v52
    %v94 = vadd.f32 %v88, %v92
    %v95 = vadd.f32 %v89, %v93
    %v96 = vadd.f32 %v78, %v94
    %v97 = vadd.f32 %v79, %v95
    %s98 = sld [smem:[#allocation2 + $0x2]]
    %v99 = vstv %s98
    %v100 = vmul.f32 %v99, %v40
    %v101 = vmul.f32 %v99, %v41
    %s102 = sld [smem:[#allocation2 + $0x82]]
    %v103 = vstv %s102
    %v104 = vmul.f32 %v103, %v24
    %v105 = vmul.f32 %v103, %v25
    %v106 = vadd.f32 %v100, %v104
    %v107 = vadd.f32 %v101, %v105
    %s108 = sld [smem:[#allocation2 + $0x102]]
    %v109 = vstv %s108
    %v110 = vmul.f32 %v109, %v51
    %v111 = vmul.f32 %v109, %v52
    %v112 = vadd.f32 %v106, %v110
    %v113 = vadd.f32 %v107, %v111
    %114 = vrot.lane.b32.xlu0 %v112, 127
    %v115 = vpop.permute.xlu0 %114
    %116 = vrot.lane.b32.xlu0 %v113, 127
    %v117 = vpop.permute.xlu0 %116
    %vm118 = vcmp.lt.s32.totalorder %v27, 127
    %v119 = vsel %vm118, %v115, %v117
    %v120 = vsel %vm118, %v117, %v115
    %vm121 = vcmp.lt.s32.totalorder %v29, 15
    %vm122 = vcmp.lt.s32.totalorder %v30, 15
    %v123 = vsel %vm121, %v119, 0.0
    %v124 = vsel %vm122, %v120, 0.0
    %v125 = vadd.f32 %v96, %v123
    %v126 = vadd.f32 %v97, %v124
    %v127 = vmin.f32 %v125, 20.0
    %v128 = vmin.f32 %v126, 20.0
    %v129 = vmul.f32 %v127, 1.442695
    %v130 = vpow.pop %v129
    %v131 = vmul.f32 %v128, 1.442695
    %v132 = vpow.pop %v131
    %v133 = vadd.f32 %v130, 2.0
    %v134 = vadd.f32 %v132, 2.0
    %v135 = vmul.f32 %v130, %v133
    %v136 = vmul.f32 %v132, %v134
    %v137 = vadd.f32 %v135, 2.0
    %v138 = vadd.f32 %v136, 2.0
    %v139 = vrcp.pop %v137
    %v140 = vmul.f32 %v135, %v139
    %v141 = vrcp.pop %v138
    %v142 = vmul.f32 %v136, %v141
    %v143 = vmul.f32 %v125, %v140
    %v144 = vmul.f32 %v126, %v142
    %145 = vst [vmem:[%s2] sm:$0xff] %v143
    %146 = vst [vmem:[%s2 + $0x8] sm:$0xff] %v144
    // Predicated region
    $region14: #{_conv_layer_jit.1} parent=1 // pred_check
      _
    $region15: #{_conv_layer_jit.1} parent=1 // pred_check_branch
      %148 = sbr.rel (0) target = $region17
    $region16: #{_conv_layer_jit.1} parent=1 // pred_region
      _
    $region17: #{_conv_layer_jit.1} parent=1 // pred_fallthru
      _
    // Predicated region
    $region18: #{_conv_layer_jit.1} parent=1 // pred_check
      _
    $region19: #{_conv_layer_jit.1} parent=1 // pred_check_branch
      %150 = sbr.rel (0) target = $region21
    $region20: #{_conv_layer_jit.1} parent=1 // pred_region
      _
    $region21: #{_conv_layer_jit.1} parent=1 // pred_fallthru
      _
    %151 = vsyncpa [#allocation3], 1

</llo_original>
